<compile_context>
chip_gen: v7x
topology: tpu7x:2x2x1
jax: 0.10.0
libtpu: 0.0.40
codegen_flags: <defaults>
</compile_context>

<pallas_src>
import functools
import math

import jax
import jax.numpy as jnp
from jax.experimental import pallas as pl
from jax.experimental.pallas import tpu as pltpu


def _round_up(x, m):
    return ((x + m - 1) // m) * m


def _cdiv(a, b):
    return -(-a // b)


def _lowbias32(v):
    """Well-mixed 32-bit integer hash (lowbias32); bijective on uint32."""
    v = v ^ (v >> 16)
    v = v * jnp.uint32(0x7FEB352D)
    v = v ^ (v >> 15)
    v = v * jnp.uint32(0x846CA68B)
    v = v ^ (v >> 16)
    return v


def _binomial_cdf_thresholds(num_samples, p):
    """uint32 thresholds t_k = round(P(Binomial(n,1-p) <= k) * 2^32), k<n."""
    q = 1.0 - p
    acc = 0.0
    out = []
    for k in range(num_samples):
        acc += math.comb(num_samples, k) * (q ** k) * ((1.0 - q) ** (num_samples - k))
        t = int(round(min(max(acc, 0.0), 1.0) * 4294967296.0))
        out.append(min(max(t, 0), 4294967295))
    return tuple(out)


def _spec(shape, index_map, *, buffers=None):
    """BlockSpec helper; falls back gracefully if pipeline_mode is unsupported."""
    if buffers is None:
        return pl.BlockSpec(shape, index_map)
    try:
        return pl.BlockSpec(shape, index_map, pipeline_mode=pl.Buffered(buffers))
    except TypeError:  # older jax without pipeline_mode kwarg
        return pl.BlockSpec(shape, index_map)


def _msd_kernel(seed_ref, x_ref, wt_ref, b_ref, o_ref, *scratch,
                thresholds, scale, n_col_tiles):
    # seed_ref: SMEM (1,) int32 (scalar prefetch)
    # x_ref : VMEM (TB, H)   activation tile (native dtype)
    # wt_ref: VMEM (H, TN)   classifier weight, transposed, bf16, lane-padded
    # b_ref : VMEM (1, TN)   bias, f32, lane-padded
    # o_ref : VMEM (TB, TN)  f32 output tile
    tb, h = x_ref.shape

    def masked_x():
        x = x_ref[...].astype(jnp.float32)
        seed_u32 = seed_ref[0].astype(jnp.uint32)
        row = jax.lax.broadcasted_iota(jnp.uint32, (tb, h), 0)
        col = jax.lax.broadcasted_iota(jnp.uint32, (tb, h), 1)
        tile = pl.program_id(0).astype(jnp.uint32)
        gid = (tile * jnp.uint32(tb) + row) * jnp.uint32(h) + col
        bits = _lowbias32(gid * jnp.uint32(0x01000193)
                          + seed_u32 * jnp.uint32(0x9E3779B9)
                          + jnp.uint32(0x7F4A7C15))
        # keep_count ~ Binomial(num_samples, 1-p) via inverse-CDF: one hash per
        # element, num_samples compares; int32 accumulate, one f32 convert.
        keep_count = jnp.zeros((tb, h), jnp.int32)
        for t in thresholds:                       # static -> unrolled
            keep_count = keep_count + (bits >= jnp.uint32(t)).astype(jnp.int32)
        xm = x * (keep_count.astype(jnp.float32) * jnp.float32(scale))
        return xm.astype(jnp.bfloat16)             # bf16 MXU operand

    if n_col_tiles == 1:
        xm = masked_x()
    else:
        xm_ref = scratch[0]

        @pl.when(pl.program_id(1) == 0)            # one mask per batch tile,
        def _():                                   # shared across all N tiles
            xm_ref[...] = masked_x()

        xm = xm_ref[...]

    acc = jnp.dot(xm, wt_ref[...], preferred_element_type=jnp.float32)
    o_ref[...] = (acc + b_ref[...]).astype(o_ref.dtype)


def prepare_classifier(w, b, *, max_tile_n=2048):
    """Transpose + lane-pad the nn.Linear params ONCE (hoisted off hot path).

    w: [C, H] (PyTorch nn.Linear layout), b: [C]
    Returns (wt [H, Cp] bf16, b2 [1, Cp] f32, tile_n).
    """
    C, H = w.shape
    Cp = _round_up(C, 128)
    if Cp <= max_tile_n:
        tile_n = Cp
    else:
        tile_n = max_tile_n                        # multiple of 128 (and 256)
        Cp = _round_up(C, tile_n)
    wt = jnp.zeros((H, Cp), jnp.bfloat16).at[:, :C].set(
        jnp.asarray(w, jnp.bfloat16).T)
    b2 = jnp.zeros((1, Cp), jnp.float32).at[:, :C].set(
        jnp.asarray(b, jnp.float32).reshape(1, C))
    return wt, b2, tile_n


def multi_sample_dropout(x, wt, b2, *, num_classes, tile_n, seed,
                         max_dropout_rate, num_samples, max_block_rows=1024):
    """x: [B, H] (any float dtype); wt/b2 from prepare_classifier -> [B, C] f32."""
    B, H = x.shape
    Hw, Cp = wt.shape
    assert Hw == H and Cp % tile_n == 0
    TN = tile_n
    nn = Cp // TN
    p = float(max_dropout_rate)
    num_samples = int(num_samples)

    # ---- VMEM budget -> batch tile rows (v7x-safe: <= 75% of per-core VMEM).
    try:
        vmem_cap = int(pltpu.get_tpu_info().vmem_capacity_bytes)
    except Exception:
        vmem_cap = 64 * 2 ** 20                    # conservative (v7x per-TC)
    vmem_budget = (vmem_cap * 3) // 4

    x_itemsize = jnp.dtype(x.dtype).itemsize
    wt_buffers = 1 if nn == 1 else 2
    fixed_bytes = wt_buffers * H * TN * 2 + 2 * TN * 4 + (1 << 16)
    per_row = 2 * H * x_itemsize + 2 * TN * 4 + (2 * H if nn > 1 else 0)
    tb_cap = max((vmem_budget - fixed_bytes) // per_row, 8)
    TB = min(B, max_block_rows, tb_cap)
    if TB < B:
        TB = max(8, (TB // 8) * 8)
    nb = _cdiv(B, TB)                              # partial last tile is fine

    needed = fixed_bytes + per_row * TB
    vmem_limit = int(min(vmem_budget, max(2 * needed, 8 * 2 ** 20)))

    thresholds = _binomial_cdf_thresholds(num_samples, p)
    keep_scale = (1.0 / (1.0 - p)) if p < 1.0 else 0.0
    kernel = functools.partial(_msd_kernel,
                               thresholds=thresholds,
                               scale=keep_scale / num_samples,
                               n_col_tiles=nn)

    seed_arr = jnp.asarray([seed], dtype=jnp.int32)
    scratch_shapes = [] if nn == 1 else [pltpu.VMEM((TB, H), jnp.bfloat16)]

    cost = pl.CostEstimate(
        flops=2 * B * H * Cp + B * H * (12 + 2 * num_samples),
        transcendentals=0,
        bytes_accessed=B * H * x_itemsize + H * Cp * 2 + Cp * 4 + B * Cp * 4,
    )

    out = pl.pallas_call(
        kernel,
        out_shape=jax.ShapeDtypeStruct((B, Cp), jnp.float32),
        grid_spec=pltpu.PrefetchScalarGridSpec(
            num_scalar_prefetch=1,
            grid=(nb, nn),
            in_specs=[
                pl.BlockSpec((TB, H), lambda i, j, s: (i, 0)),       # x tile
                _spec((H, TN), lambda i, j, s: (0, j),
                      buffers=1 if nn == 1 else None),               # W^T bf16
                _spec((1, TN), lambda i, j, s: (0, j),
                      buffers=1 if nn == 1 else None),               # bias f32
            ],
            out_specs=pl.BlockSpec((TB, TN), lambda i, j, s: (i, j)),
            scratch_shapes=scratch_shapes,
        ),
        compiler_params=pltpu.CompilerParams(
            dimension_semantics=("parallel", "arbitrary"),
            vmem_limit_bytes=vmem_limit,
        ),
        cost_estimate=cost,
    )(seed_arr, x, wt, b2)

    return out[:, :num_classes] if Cp != num_classes else out


if __name__ == "__main__":
    B, H, C = 8, 32, 8                  # batch, hidden, num_classes
    MAX_DROPOUT_RATE = 0.2
    NUM_SAMPLES = 4

    key = jax.random.PRNGKey(0)
    kx, kw, kb = jax.random.split(key, 3)

    x = jax.random.normal(kx, (B, H), dtype=jnp.float32)
    # Deterministic nn.Linear-style init: U(-1/sqrt(H), 1/sqrt(H))
    bound = 1.0 / (H ** 0.5)
    w = jax.random.uniform(kw, (C, H), jnp.float32, -bound, bound)
    b = jax.random.uniform(kb, (C,), jnp.float32, -bound, bound)

    wt, b2, tile_n = prepare_classifier(w, b)      # hoisted off the hot path

    run = functools.partial(multi_sample_dropout, num_classes=C, tile_n=tile_n,
                            num_samples=NUM_SAMPLES)

    out = run(x, wt, b2, seed=0, max_dropout_rate=MAX_DROPOUT_RATE)
    jax.block_until_ready(out)
    assert out.shape == (B, C) and out.dtype == jnp.float32
    assert bool(jnp.all(jnp.isfinite(out)))

    # Determinism: same seed -> identical output.
    out2 = run(x, wt, b2, seed=0, max_dropout_rate=MAX_DROPOUT_RATE)
    assert bool(jnp.all(out == out2))

    # p = 0 collapses to a plain Linear layer (bf16-operand tolerance).
    out_p0 = run(x, wt, b2, seed=0, max_dropout_rate=0.0)
    ref = x @ w.T + b
    assert bool(jnp.all(jnp.abs(out_p0 - ref) < 0.1))

    print("KERNEL_OK")
</pallas_src>

<mosaic_0001>
module attributes {stable_mosaic.version = 11 : i64} {
  func.func @_msd_kernel(%arg0: i32, %arg1: i32, %arg2: memref<1xi32, #tpu.memory_space<smem>>, %arg3: memref<8x32xf32, #tpu.memory_space<vmem>>, %arg4: memref<32x128xbf16, #tpu.memory_space<vmem>>, %arg5: memref<1x128xf32, #tpu.memory_space<vmem>>, %arg6: memref<8x128xf32, #tpu.memory_space<vmem>>) attributes {dimension_semantics = [#tpu.dimension_semantics<parallel>, #tpu.dimension_semantics<arbitrary>], iteration_bounds = array<i64: 1, 1>, scalar_prefetch = 1 : i64, scratch_operands = 0 : i64, tpu.core_type = #tpu.core_type<tc>, window_params = [{transform_indices = @transform_0, window_bounds = array<i64: 8, 32>}, {pipeline_mode = #tpu.pipeline_mode<synchronous>, transform_indices = @transform_1, window_bounds = array<i64: 32, 128>}, {pipeline_mode = #tpu.pipeline_mode<synchronous>, transform_indices = @transform_2, window_bounds = array<i64: 1, 128>}, {transform_indices = @transform_3, window_bounds = array<i64: 8, 128>}]} {
    %c0 = arith.constant 0 : index
    %c0_0 = arith.constant 0 : index
    %0 = vector.load %arg3[%c0, %c0_0] : memref<8x32xf32, #tpu.memory_space<vmem>>, vector<8x32xf32>
    %c0_1 = arith.constant 0 : index
    %1 = memref.load %arg2[%c0_1] : memref<1xi32, #tpu.memory_space<smem>>
    %2 = tpu.iota {dimensions = array<i32: 0>} : vector<8x32xi32>
    %3 = tpu.iota {dimensions = array<i32: 1>} : vector<8x32xi32>
    %c8_i32 = arith.constant 8 : i32
    %4 = arith.muli %arg0, %c8_i32 : i32
    %5 = vector.broadcast %4 : i32 to vector<8x32xi32>
    %6 = arith.addi %5, %2 : vector<8x32xi32>
    %c32_i32 = arith.constant 32 : i32
    %7 = vector.broadcast %c32_i32 : i32 to vector<8x32xi32>
    %8 = arith.muli %6, %7 : vector<8x32xi32>
    %9 = arith.addi %8, %3 : vector<8x32xi32>
    %c16777619_i32 = arith.constant 16777619 : i32
    %10 = vector.broadcast %c16777619_i32 : i32 to vector<8x32xi32>
    %11 = arith.muli %9, %10 : vector<8x32xi32>
    %c-1640531527_i32 = arith.constant -1640531527 : i32
    %12 = arith.muli %1, %c-1640531527_i32 : i32
    %13 = vector.broadcast %12 : i32 to vector<8x32xi32>
    %14 = arith.addi %11, %13 : vector<8x32xi32>
    %c2135587861_i32 = arith.constant 2135587861 : i32
    %15 = vector.broadcast %c2135587861_i32 : i32 to vector<8x32xi32>
    %16 = arith.addi %14, %15 : vector<8x32xi32>
    %c16_i32 = arith.constant 16 : i32
    %17 = vector.broadcast %c16_i32 : i32 to vector<8x32xi32>
    %18 = arith.shrui %16, %17 : vector<8x32xi32>
    %19 = arith.xori %16, %18 : vector<8x32xi32>
    %c2146121005_i32 = arith.constant 2146121005 : i32
    %20 = vector.broadcast %c2146121005_i32 : i32 to vector<8x32xi32>
    %21 = arith.muli %19, %20 : vector<8x32xi32>
    %c15_i32 = arith.constant 15 : i32
    %22 = vector.broadcast %c15_i32 : i32 to vector<8x32xi32>
    %23 = arith.shrui %21, %22 : vector<8x32xi32>
    %24 = arith.xori %21, %23 : vector<8x32xi32>
    %c-2073254261_i32 = arith.constant -2073254261 : i32
    %25 = vector.broadcast %c-2073254261_i32 : i32 to vector<8x32xi32>
    %26 = arith.muli %24, %25 : vector<8x32xi32>
    %c16_i32_2 = arith.constant 16 : i32
    %27 = vector.broadcast %c16_i32_2 : i32 to vector<8x32xi32>
    %28 = arith.shrui %26, %27 : vector<8x32xi32>
    %29 = arith.xori %26, %28 : vector<8x32xi32>
    %c0_i32 = arith.constant 0 : i32
    %30 = vector.broadcast %c0_i32 : i32 to vector<8x32xi32>
    %c6871948_i32 = arith.constant 6871948 : i32
    %31 = vector.broadcast %c6871948_i32 : i32 to vector<8x32xi32>
    %32 = arith.cmpi uge, %29, %31 : vector<8x32xi32>
    %33 = arith.extui %32 : vector<8x32xi1> to vector<8x32xi32>
    %34 = arith.addi %30, %33 : vector<8x32xi32>
    %c116823110_i32 = arith.constant 116823110 : i32
    %35 = vector.broadcast %c116823110_i32 : i32 to vector<8x32xi32>
    %36 = arith.cmpi uge, %29, %35 : vector<8x32xi32>
    %37 = arith.extui %36 : vector<8x32xi1> to vector<8x32xi32>
    %38 = arith.addi %34, %37 : vector<8x32xi32>
    %c776530087_i32 = arith.constant 776530087 : i32
    %39 = vector.broadcast %c776530087_i32 : i32 to vector<8x32xi32>
    %40 = arith.cmpi uge, %29, %39 : vector<8x32xi32>
    %41 = arith.extui %40 : vector<8x32xi1> to vector<8x32xi32>
    %42 = arith.addi %38, %41 : vector<8x32xi32>
    %c-1759218604_i32 = arith.constant -1759218604 : i32
    %43 = vector.broadcast %c-1759218604_i32 : i32 to vector<8x32xi32>
    %44 = arith.cmpi uge, %29, %43 : vector<8x32xi32>
    %45 = arith.extui %44 : vector<8x32xi1> to vector<8x32xi32>
    %46 = arith.addi %42, %45 : vector<8x32xi32>
    %47 = arith.sitofp %46 : vector<8x32xi32> to vector<8x32xf32>
    %cst = arith.constant 3.125000e-01 : f32
    %48 = vector.broadcast %cst : f32 to vector<8x32xf32>
    %49 = arith.mulf %47, %48 : vector<8x32xf32>
    %50 = arith.mulf %0, %49 : vector<8x32xf32>
    %51 = arith.truncf %50 : vector<8x32xf32> to vector<8x32xbf16>
    %c0_3 = arith.constant 0 : index
    %c0_4 = arith.constant 0 : index
    %52 = vector.load %arg4[%c0_3, %c0_4] : memref<32x128xbf16, #tpu.memory_space<vmem>>, vector<32x128xbf16>
    %cst_5 = arith.constant dense<0.000000e+00> : vector<8x128xf32>
    %53 = tpu.matmul %51, %52, %cst_5 {dimension_numbers = #tpu.dot_dimension_numbers<[1], [0], [0], [1], [0, 0, 1, 1], [], []>} : vector<8x32xbf16>, vector<32x128xbf16>, vector<8x128xf32> -> vector<8x128xf32>
    %c0_6 = arith.constant 0 : index
    %c0_7 = arith.constant 0 : index
    %54 = vector.load %arg5[%c0_6, %c0_7] : memref<1x128xf32, #tpu.memory_space<vmem>>, vector<1x128xf32>
    %55 = vector.broadcast %54 : vector<1x128xf32> to vector<8x128xf32>
    %56 = arith.addf %53, %55 : vector<8x128xf32>
    %c0_8 = arith.constant 0 : index
    %c0_9 = arith.constant 0 : index
    %57 = vector.load %arg6[%c0_8, %c0_9] : memref<8x128xf32, #tpu.memory_space<vmem>>, vector<8x128xf32>
    tpu.vector_store %arg6[%c0_8, %c0_9], %56 {strides = array<i32>} : memref<8x128xf32, #tpu.memory_space<vmem>>, vector<8x128xf32>,
    return
  }
  func.func @transform_0(%arg0: i32, %arg1: i32, %arg2: memref<1xi32, #tpu.memory_space<smem>>) -> (i32, i32) {
    %c0_i32 = arith.constant 0 : i32
    %c0_i32_0 = arith.constant 0 : i32
    return %arg0, %c0_i32 : i32, i32
  }
  func.func @transform_1(%arg0: i32, %arg1: i32, %arg2: memref<1xi32, #tpu.memory_space<smem>>) -> (i32, i32) {
    %c0_i32 = arith.constant 0 : i32
    %c0_i32_0 = arith.constant 0 : i32
    return %c0_i32, %arg1 : i32, i32
  }
  func.func @transform_2(%arg0: i32, %arg1: i32, %arg2: memref<1xi32, #tpu.memory_space<smem>>) -> (i32, i32) {
    %c0_i32 = arith.constant 0 : i32
    %c0_i32_0 = arith.constant 0 : i32
    return %c0_i32, %arg1 : i32, i32
  }
  func.func @transform_3(%arg0: i32, %arg1: i32, %arg2: memref<1xi32, #tpu.memory_space<smem>>) -> (i32, i32) {
    %c0_i32 = arith.constant 0 : i32
    return %arg0, %arg1 : i32, i32
  }
}

</mosaic_0001>

<llo_original>
// kernel: tpu_custom_call.1
$region0: #{tpu_custom_call.1}
  #allocation0 [shape = 'u32[]', space=smem, size = 0x4, offset = 0x4, fixed_abs, tag = 'smem constant byte address 0x4 - core index']
  #allocation1 [shape = 'u32[144,128]{1,0:T(1,128)}', space=vmem, size = 0x12000, scoped, tag = 'internal scratch']
  #allocation2 [shape = 's32[1]{0}', space=sflag, size = 0x4, scoped, tag = 'scoped memory for tpu_custom_call.1']
  #allocation3 [shape = 's32[1]{0:T(128)S(6)}', space=smem, size = 0x200, scoped, tag = 'prefetched SMEM operand 0']
  %s0 = inlined_call_operand.<no memory space> [shape: s32[1], index: 0, kind: input, shape index: {}]
  %s1 = inlined_call_operand.hbm [shape: f32[8,32], index: 1, kind: input, shape index: {}]
  %s2 = inlined_call_operand.hbm [shape: bf16[32,128], index: 2, kind: input, shape index: {}]
  %s3 = inlined_call_operand.vmem [shape: f32[1,128], index: 3, kind: input, shape index: {}]
  %s4 = inlined_call_operand.hbm [shape: f32[8,128], index: 4, kind: output, shape index: {}]
  %s5 = sld [smem:[#allocation0]]
  $region30: #{tpu_custom_call.1} parent=0
    _
  %s7 = ssub.s32 1, %s5
  %s8 = scalar_select 0, %s7, %s5
  %9 = sst [smem:[#allocation3]] %s0
  $region1: #{tpu_custom_call.1} parent=0
    #allocation4 [shape = 'u8[4096]{0}', space=vmem, size = 0x1000, scoped, tag = 'input window, operand 1, single buffered']
    #allocation5 [shape = 's32[1]{0}', space=sflag, size = 0x4, scoped, tag = 'scoped memory for tpu_custom_call.1']
    #allocation6 [shape = 's32[1]{0}', space=sflag, size = 0x4, scoped, tag = 'scoped memory for tpu_custom_call.1']
    #allocation7 [shape = 'u8[8192]{0}', space=vmem, size = 0x2000, scoped, tag = 'input window, operand 2, single buffered']
    #allocation8 [shape = 's32[1]{0}', space=sflag, size = 0x4, scoped, tag = 'scoped memory for tpu_custom_call.1']
    #allocation9 [shape = 'u8[4096]{0}', space=vmem, size = 0x1000, scoped, tag = 'output window, operand 0, single buffered']
    %10 = vsyncpa [#allocation5], 0
    %11 = vsyncpa [#allocation8], 0
    %12 = vsyncpa [#allocation6], 0
    // Predicated region
    $region2: #{tpu_custom_call.1} parent=1 // pred_check
      _
    $region3: #{tpu_custom_call.1} parent=1 // pred_check_branch
      %14 = sbr.rel (0) target = $region5
    $region4: #{tpu_custom_call.1} parent=1 // pred_region
      %s16 = ssub.s32 128, 128
      %17 = vsyncadd [#allocation5], %s16
      %s19 = sshll.u32 [#allocation4], 4
      %s20 = int_to_ptr.vmem [resolvable:$true] %s19
      %22 = dma.hbm_to_vmem [thread:$0]  %s1, 128, %s20, [#allocation5]
    $region5: #{tpu_custom_call.1} parent=1 // pred_fallthru
      _
    // Predicated region
    $region6: #{tpu_custom_call.1} parent=1 // pred_check
      _
    $region7: #{tpu_custom_call.1} parent=1 // pred_check_branch
      %24 = sbr.rel (0) target = $region9
    $region8: #{tpu_custom_call.1} parent=1 // pred_region
      %s26 = ssub.s32 256, 256
      %27 = vsyncadd [#allocation8], %s26
      %s28 = sshll.u32 [#allocation7], 4
      %s29 = int_to_ptr.vmem [resolvable:$true] %s28
      %34 = dma.hbm_to_vmem [thread:$0]  %s2, 256, %s29, [#allocation8], 64, 64, 4
    $region9: #{tpu_custom_call.1} parent=1 // pred_fallthru
      _
    // Predicated region
    $region10: #{tpu_custom_call.1} parent=1 // pred_check
      _
    $region11: #{tpu_custom_call.1} parent=1 // pred_check_branch
      %36 = sbr.rel (0) target = $region13
    $region12: #{tpu_custom_call.1} parent=1 // pred_region
      _
    $region13: #{tpu_custom_call.1} parent=1 // pred_fallthru
      _
    // Predicated region
    $region14: #{tpu_custom_call.1} parent=1 // pred_check
      _
    $region15: #{tpu_custom_call.1} parent=1 // pred_check_branch
      %38 = sbr.rel (0) target = $region17
    $region16: #{tpu_custom_call.1} parent=1 // pred_region
      %39 = dma.done [#allocation5], 128
    $region17: #{tpu_custom_call.1} parent=1 // pred_fallthru
      _
    // Predicated region
    $region18: #{tpu_custom_call.1} parent=1 // pred_check
      _
    $region19: #{tpu_custom_call.1} parent=1 // pred_check_branch
      %41 = sbr.rel (0) target = $region21
    $region20: #{tpu_custom_call.1} parent=1 // pred_region
      %42 = dma.done [#allocation8], 256
    $region21: #{tpu_custom_call.1} parent=1 // pred_fallthru
      _
    %v44 = vld [vmem:[#allocation4] sm:$0xff]
    %s45 = sld [smem:[#allocation3]]
    %v46 = vlaneseq
    %v47 = vshrl.u32 %v46, 7
    %v48 = vlaneseq
    %v49 = vand.u32 %v48, 127
    %s50 = smul.u32 0, 8
    %v51 = vstv %s50
    %v52 = vadd.s32 %v51, %v47
    %v53 = vmul.u32 %v52, 32
    %v54 = vadd.s32 %v53, %v49
    %v55 = vmul.u32 %v54, 16777619
    %s56 = smul.u32 %s45, 2654435769
    %v57 = vstv %s56
    %v58 = vadd.s32 %v55, %v57
    %v59 = vadd.s32 %v58, 2135587861
    %v60 = vshrl.u32 %v59, 16
    %v61 = vxor.u32 %v59, %v60
    %v62 = vmul.u32 %v61, 2146121005
    %v63 = vshrl.u32 %v62, 15
    %v64 = vxor.u32 %v62, %v63
    %v65 = vmul.u32 %v64, 2221713035
    %v66 = vshrl.u32 %v65, 16
    %v67 = vxor.u32 %v65, %v66
    %vm68 = vcmp.ge.u32.totalorder %v67, 6871948
    %v69 = vsel %vm68, 1, 0
    %vm70 = vcmp.ge.u32.totalorder %v67, 116823110
    %v71 = vsel %vm70, 1, 0
    %v72 = vadd.s32 %v69, %v71
    %vm73 = vcmp.ge.u32.totalorder %v67, 776530087
    %v74 = vsel %vm73, 1, 0
    %v75 = vadd.s32 %v72, %v74
    %vm76 = vcmp.ge.u32.totalorder %v67, 2535748692
    %v77 = vsel %vm76, 1, 0
    %v78 = vadd.s32 %v75, %v77
    %v79 = vcvt.s32.f32 %v78
    %v80 = vmul.f32 %v79, 0.3125
    %v81 = vmul.f32 %v44, %v80
    %v82 = vpack.c.bf16 %v81, %v81
    %v83 = vld [vmem:[#allocation7] sm:$0xf]
    %v84 = vld [vmem:[#allocation7 + $0x4] sm:$0xf]
    %v85 = vld [vmem:[#allocation7 + $0x8] sm:$0xf]
    %v86 = vld [vmem:[#allocation7 + $0xc] sm:$0xf]
    %v87 = vld [vmem:[%s3] sm:$0x1]
    %v89 = vlaneseq
    %v90 = vshrl.u32 %v89, 7
    %v91 = vsub.s32 0, %v90
    %v92 = vrot.slane %v87, %v91
    %v98 = vunpack.c.l.b16 %v83
    %v99 = vunpack.c.l.b16 %v84
    %v100 = vunpack.c.l.b16 %v85
    %v101 = vunpack.c.l.b16 %v86
    %v102 = vpack.c.b16 %v99, %v98
    %v103 = vpack.c.b16 %v101, %v100
    %vm106 = vcmask 261120
    %v108 = vsel %vm106, %v82, 0
    %110 = vmatprep.subr.bf16.mxu0 0
    %111 = vmatpush1.bf16.msra.mxu0 %v102
    %112 = vmatprep.subr.bf16.mxu0 0
    %113 = vmatpush1.bf16.msra.mxu0 %v103
    %114 = vmatprep.subr.bf16.mxu0 0
    %115 = vmatpush1.bf16.msra.mxu0 0
    %116 = vmatprep.subr.bf16.mxu0 0
    %117 = vmatpush1.bf16.msra.mxu0 0
    %118 = vmatprep.subr.bf16.mxu0 0
    %119 = vmatpush1.bf16.msra.mxu0 0
    %120 = vmatprep.subr.bf16.mxu0 0
    %121 = vmatpush1.bf16.msra.mxu0 0
    %122 = vmatprep.subr.bf16.mxu0 0
    %123 = vmatpush1.bf16.msra.mxu0 0
    %124 = vmatprep.subr.bf16.mxu0 0
    %125 = vmatpush1.bf16.msra.mxu0 0
    %126 = vmatprep.subr.bf16.mxu0 0
    %127 = vmatpush1.bf16.msra.mxu0 0
    %128 = vmatprep.subr.bf16.mxu0 0
    %129 = vmatpush1.bf16.msra.mxu0 0
    %130 = vmatprep.subr.bf16.mxu0 0
    %131 = vmatpush1.bf16.msra.mxu0 0
    %132 = vmatprep.subr.bf16.mxu0 0
    %133 = vmatpush1.bf16.msra.mxu0 0
    %134 = vmatprep.subr.bf16.mxu0 0
    %135 = vmatpush1.bf16.msra.mxu0 0
    %136 = vmatprep.subr.bf16.mxu0 0
    %137 = vmatpush1.bf16.msra.mxu0 0
    %138 = vmatprep.subr.bf16.mxu0 0
    %139 = vmatpush1.bf16.msra.mxu0 0
    %140 = vmatprep.subr.bf16.mxu0 0
    %141 = vmatpush1.bf16.msra.mxu0 0
    %142 = vmatprep.mubr.bf16.mxu0 0
    %143 = vmatmul.mubr.bf16.gmra.mrb[0].mxu0 %v108
    %v144 = vpop.f32.mrb[0].mxu0
    %v145 = vadd.f32 %v92, %v144
    %v146 = vpop.f32.mrb[0].mxu0
    %v147 = vpop.f32.mrb[0].mxu0
    %v148 = vpop.f32.mrb[0].mxu0
    %149 = vdwg.mxu0
    %150 = vst [vmem:[#allocation9] sm:$0xff] %v145
    // Predicated region
    $region22: #{tpu_custom_call.1} parent=1 // pred_check
      _
    $region23: #{tpu_custom_call.1} parent=1 // pred_check_branch
      %152 = sbr.rel (0) target = $region25
    $region24: #{tpu_custom_call.1} parent=1 // pred_region
      %s154 = ssub.s32 128, 128
      %155 = vsyncadd [#allocation6], %s154
      %s157 = sshll.u32 [#allocation9], 4
      %s158 = int_to_ptr.vmem [resolvable:$true] %s157
      %160 = dma.vmem_to_hbm [thread:$0]  %s158, 128, %s4, [#allocation6]
    $region25: #{tpu_custom_call.1} parent=1 // pred_fallthru
      _
    // Predicated region
    $region26: #{tpu_custom_call.1} parent=1 // pred_check
      _
    $region27: #{tpu_custom_call.1} parent=1 // pred_check_branch
      %162 = sbr.rel (0) target = $region29
    $region28: #{tpu_custom_call.1} parent=1 // pred_region
      %163 = dma.done [#allocation6], 128
    $region29: #{tpu_custom_call.1} parent=1 // pred_fallthru
      _
    %164 = vsyncpa [#allocation5], 1
    %165 = vsyncpa [#allocation8], 1
    %166 = vsyncpa [#allocation6], 1

</llo_original>
